<compile_context>
chip_gen: v7x
topology: tpu7x:2x2x1
jax: 0.10.0
libtpu: 0.0.40
codegen_flags: <defaults>
</compile_context>

<pallas_src>
import jax
import jax.numpy as jnp
from jax.experimental import pallas as pl
from jax.experimental.pallas import tpu as pltpu


def _round_up(x, m):
    return (x + m - 1) // m * m


def _vmem_cap_bytes():
    """Physical VMEM per TensorCore with headroom (v7x has only 64 MiB/TC)."""
    cap = 64 * 2 ** 20  # conservative default = v7x
    try:
        cap = int(pltpu.get_tpu_info().vmem_capacity_bytes)
    except Exception:
        pass
    return max(min(cap - 8 * 2 ** 20, 112 * 2 ** 20), 32 * 2 ** 20)


# -----------------------------------------------------------------------------
# Kernel 1: tiled conv-as-GEMM, accumulating into the resident f32 output block,
#           fused per-(row-tile, channel) sum / sum-of-squares for training BN.
# -----------------------------------------------------------------------------
def conv_stats_kernel(p_ref, w_ref, conv_ref, sum_ref, ssq_ref):
    k = pl.program_id(2)
    nk = pl.num_programs(2)

    @pl.when(k == 0)
    def _():
        conv_ref[...] = jnp.zeros_like(conv_ref)
        sum_ref[...] = jnp.zeros_like(sum_ref)
        ssq_ref[...] = jnp.zeros_like(ssq_ref)

    conv_ref[...] += jnp.dot(p_ref[...], w_ref[...],
                             preferred_element_type=jnp.float32)

    @pl.when(k == nk - 1)
    def _():
        y = conv_ref[...]
        sum_ref[...] = jnp.sum(y, axis=0, keepdims=True)[None]
        ssq_ref[...] = jnp.sum(y * y, axis=0, keepdims=True)[None]


# -----------------------------------------------------------------------------
# Kernel 2: BN scale/shift + SiLU (elementwise, lane dense, f32 vector math)
# -----------------------------------------------------------------------------
def bn_silu_kernel(conv_ref, scale_ref, bias_ref, o_ref):
    y = conv_ref[...].astype(jnp.float32) * scale_ref[...] + bias_ref[...]
    o_ref[...] = (y * jax.nn.sigmoid(y)).astype(o_ref.dtype)


# -----------------------------------------------------------------------------
# Wrapper: layout glue + two pallas_calls
# -----------------------------------------------------------------------------
def cnn_block(x_nchw, weight_oihw, gamma, beta, *, stride, padding, groups=1,
              eps=1e-5, mxu_dtype=None, use_bf16_mxu=False):
    """CNNBlock forward. x_nchw: (N, Cin, H, W); weight: (Cout, Cin, K, K)."""
    if groups != 1:
        # TODO(synk): depthwise / grouped conv path not implemented.
        raise NotImplementedError("only groups=1 is supported")

    N, Cin, H, W = x_nchw.shape
    Cout, _, K, _ = weight_oihw.shape
    Hout = (H + 2 * padding - K) // stride + 1
    Wout = (W + 2 * padding - K) // stride + 1
    R = N * Hout * Wout
    KKC = K * K * Cin

    if mxu_dtype is None:
        mxu_dtype = (jnp.bfloat16 if (x_nchw.dtype == jnp.bfloat16 or use_bf16_mxu)
                     else jnp.float32)
    in_itemsize = jnp.dtype(mxu_dtype).itemsize
    out_dtype = x_nchw.dtype
    out_itemsize = jnp.dtype(out_dtype).itemsize
    sub_pack = max(8, 32 // in_itemsize)          # sublane packing for MXU dtype

    # ---- layout glue (plain JAX/XLA): NHWC, zero pad, im2col, lane padding ----
    x_nhwc = jnp.transpose(x_nchw, (0, 2, 3, 1))
    xp = jnp.pad(x_nhwc, ((0, 0), (padding, padding), (padding, padding), (0, 0)))
    taps = [xp[:, kh:kh + (Hout - 1) * stride + 1:stride,
               kw:kw + (Wout - 1) * stride + 1:stride, :]
            for kh in range(K) for kw in range(K)]
    patches = (taps[0] if K == 1 else jnp.concatenate(taps, axis=-1)).reshape(R, KKC)
    w = jnp.transpose(weight_oihw, (2, 3, 1, 0)).reshape(KKC, Cout)

    # ---- tiling: big lane-dense tiles, 256-multiples for the v6e/v7x MXU -----
    row_tile = 512 if R >= 512 else _round_up(R, sub_pack)
    R_pad = _round_up(R, row_tile)
    n_row = R_pad // row_tile

    Cout_pad = _round_up(Cout, 128) if Cout <= 128 else _round_up(Cout, 256)
    if Cout_pad >= 512 and Cout_pad % 512 == 0:
        cout_tile = 512
    elif Cout_pad % 256 == 0:
        cout_tile = min(Cout_pad, 256)
    else:
        cout_tile = 128
    n_cout = Cout_pad // cout_tile

    KKC_pad = _round_up(KKC, 128)
    if KKC_pad <= 1024:
        kkc_tile = KKC_pad
    else:
        KKC_pad = _round_up(KKC, 512)
        kkc_tile = 512
    n_k = KKC_pad // kkc_tile

    patches = jnp.pad(patches, ((0, R_pad - R), (0, KKC_pad - KKC))).astype(mxu_dtype)
    w = jnp.pad(w, ((0, KKC_pad - KKC), (0, Cout_pad - Cout))).astype(mxu_dtype)

    vmem_cap = _vmem_cap_bytes()
    est1 = (2 * row_tile * kkc_tile * in_itemsize      # patches (double buffered)
            + 2 * kkc_tile * cout_tile * in_itemsize   # weights (double buffered)
            + 2 * row_tile * cout_tile * 4             # resident conv out blocks
            + 4 * 2 * cout_tile * 4)                   # stats outputs
    vmem1 = int(min(max(2 * est1, 32 * 2 ** 20), vmem_cap))

    grid_a = (n_row, n_cout, n_k)
    conv_f32, psum, pssq = pl.pallas_call(
        conv_stats_kernel,
        out_shape=(
            jax.ShapeDtypeStruct((R_pad, Cout_pad), jnp.float32),
            jax.ShapeDtypeStruct((n_row, 1, Cout_pad), jnp.float32),
            jax.ShapeDtypeStruct((n_row, 1, Cout_pad), jnp.float32),
        ),
        grid_spec=pltpu.PrefetchScalarGridSpec(
            num_scalar_prefetch=0,
            grid=grid_a,
            in_specs=[
                pl.BlockSpec((row_tile, kkc_tile), lambda i, j, k: (i, k)),
                pl.BlockSpec((kkc_tile, cout_tile), lambda i, j, k: (k, j)),
            ],
            out_specs=[
                pl.BlockSpec((row_tile, cout_tile), lambda i, j, k: (i, j)),
                pl.BlockSpec((1, 1, cout_tile), lambda i, j, k: (i, 0, j)),
                pl.BlockSpec((1, 1, cout_tile), lambda i, j, k: (i, 0, j)),
            ],
        ),
        compiler_params=pltpu.CompilerParams(
            dimension_semantics=("parallel", "parallel", "arbitrary"),
            vmem_limit_bytes=vmem1,
        ),
        cost_estimate=pl.CostEstimate(
            flops=2 * R_pad * KKC_pad * Cout_pad,
            transcendentals=0,
            bytes_accessed=int(patches.size * in_itemsize + w.size * in_itemsize
                               + R_pad * Cout_pad * 4),
        ),
    )(patches, w)

    # ---- fold BN training stats into per-channel scale / bias (tiny JAX) ----
    count = jnp.float32(R)
    sums = jnp.sum(psum, axis=0)                       # (1, Cout_pad)
    ssq = jnp.sum(pssq, axis=0)
    mean = sums / count
    var = jnp.maximum(ssq / count - mean * mean, 0.0)  # biased variance
    inv = jax.lax.rsqrt(var + jnp.float32(eps))
    g_pad = jnp.pad(gamma.astype(jnp.float32), (0, Cout_pad - Cout)).reshape(1, Cout_pad)
    b_pad = jnp.pad(beta.astype(jnp.float32), (0, Cout_pad - Cout)).reshape(1, Cout_pad)
    scale = g_pad * inv
    bias = b_pad - mean * scale

    # ---- kernel 2: BN + SiLU with its own (larger) lane-dense blocks ----------
    ct2 = Cout_pad if Cout_pad <= 1024 else cout_tile
    rt2 = row_tile
    while (rt2 * 2 <= 2048 and R_pad % (rt2 * 2) == 0
           and rt2 * 2 * ct2 * (4 + out_itemsize) <= (8 << 20)):
        rt2 *= 2
    grid_b = (Cout_pad // ct2, R_pad // rt2)           # Cout outer, rows inner

    est2 = 2 * rt2 * ct2 * (4 + out_itemsize) + 4 * ct2 * 4
    vmem2 = int(min(max(2 * est2, 32 * 2 ** 20), vmem_cap))

    # Reuse the conv intermediate's HBM buffer for the output when dtypes match.
    alias = {0: 0} if jnp.dtype(out_dtype) == jnp.dtype(jnp.float32) else {}

    out_flat = pl.pallas_call(
        bn_silu_kernel,
        out_shape=jax.ShapeDtypeStruct((R_pad, Cout_pad), out_dtype),
        grid_spec=pltpu.PrefetchScalarGridSpec(
            num_scalar_prefetch=0,
            grid=grid_b,
            in_specs=[
                pl.BlockSpec((rt2, ct2), lambda j, i: (i, j)),
                pl.BlockSpec((1, ct2), lambda j, i: (0, j)),   # fetched once per j
                pl.BlockSpec((1, ct2), lambda j, i: (0, j)),
            ],
            out_specs=pl.BlockSpec((rt2, ct2), lambda j, i: (i, j)),
        ),
        compiler_params=pltpu.CompilerParams(
            dimension_semantics=("parallel", "parallel"),
            vmem_limit_bytes=vmem2,
        ),
        cost_estimate=pl.CostEstimate(
            flops=4 * R_pad * Cout_pad,
            transcendentals=R_pad * Cout_pad,
            bytes_accessed=int(R_pad * Cout_pad * (4 + out_itemsize)),
        ),
        input_output_aliases=alias,
    )(conv_f32, scale, bias)

    out = out_flat[:R, :Cout].reshape(N, Hout, Wout, Cout)
    return jnp.transpose(out, (0, 3, 1, 2))            # back to NCHW


# -----------------------------------------------------------------------------
# Pure-JAX reference (matches PyTorch CNNBlock.forward, training-mode BN)
# -----------------------------------------------------------------------------
def reference(x, weight, gamma, beta, stride, padding, eps=1e-5):
    y = jax.lax.conv_general_dilated(
        x, weight, (stride, stride),
        [(padding, padding), (padding, padding)],
        dimension_numbers=("NCHW", "OIHW", "NCHW"),
    )
    mean = jnp.mean(y, axis=(0, 2, 3), keepdims=True)
    var = jnp.mean((y - mean) ** 2, axis=(0, 2, 3), keepdims=True)
    z = (y - mean) / jnp.sqrt(var + eps)
    z = z * gamma.reshape(1, -1, 1, 1) + beta.reshape(1, -1, 1, 1)
    return z * jax.nn.sigmoid(z)


if __name__ == "__main__":
    key = jax.random.PRNGKey(0)

    configs = [
        # (N, Cin, H, W, Cout, K, stride, padding)
        (2, 4, 16, 16, 8, 3, 1, 1),     # CNNBlock(4, 8, 3, 1, 1)
        (2, 4, 16, 16, 16, 3, 2, 1),    # CNNBlock(4, 16, 3, 2, 1)
    ]

    for idx, (N, Cin, H, W, Cout, K, stride, padding) in enumerate(configs):
        k_x, k_w, k_g, k_b, key = jax.random.split(key, 5)
        x = jax.random.normal(k_x, (N, Cin, H, W), jnp.float32)
        weight = 0.1 * jax.random.normal(k_w, (Cout, Cin, K, K), jnp.float32)
        gamma = 1.0 + 0.1 * jax.random.normal(k_g, (Cout,), jnp.float32)
        beta = 0.1 * jax.random.normal(k_b, (Cout,), jnp.float32)

        out = cnn_block(x, weight, gamma, beta, stride=stride, padding=padding)
        out = jax.block_until_ready(out)

        ref = reference(x, weight, gamma, beta, stride, padding)
        Hout = (H + 2 * padding - K) // stride + 1
        Wout = (W + 2 * padding - K) // stride + 1
        assert out.shape == (N, Cout, Hout, Wout), (idx, out.shape)
        assert jnp.allclose(out, ref, atol=2e-4, rtol=2e-4), \
            f"config {idx}: max abs err = {jnp.max(jnp.abs(out - ref))}"

    print("KERNEL_OK")
</pallas_src>

<mosaic_0001>
module attributes {stable_mosaic.version = 11 : i64} {
  func.func @conv_stats_kernel(%arg0: i32, %arg1: i32, %arg2: i32, %arg3: memref<512x128xf32, #tpu.memory_space<vmem>>, %arg4: memref<128x128xf32, #tpu.memory_space<vmem>>, %arg5: memref<512x128xf32, #tpu.memory_space<vmem>>, %arg6: memref<1x1x128xf32, #tpu.memory_space<vmem>>, %arg7: memref<1x1x128xf32, #tpu.memory_space<vmem>>) attributes {dimension_semantics = [#tpu.dimension_semantics<parallel>, #tpu.dimension_semantics<parallel>, #tpu.dimension_semantics<arbitrary>], iteration_bounds = array<i64: 1, 1, 1>, scalar_prefetch = 0 : i64, scratch_operands = 0 : i64, tpu.core_type = #tpu.core_type<tc>, window_params = [{transform_indices = @transform_0, window_bounds = array<i64: 512, 128>}, {transform_indices = @transform_1, window_bounds = array<i64: 128, 128>}, {transform_indices = @transform_2, window_bounds = array<i64: 512, 128>}, {transform_indices = @transform_3, window_bounds = array<i64: 1, 1, 128>}, {transform_indices = @transform_4, window_bounds = array<i64: 1, 1, 128>}]} {
    %c0_i32 = arith.constant 0 : i32
    %0 = arith.cmpi eq, %arg2, %c0_i32 : i32
    %1 = arith.extui %0 : i1 to i32
    %c0_i32_0 = arith.constant 0 : i32
    %2 = arith.cmpi ne, %1, %c0_i32_0 : i32
    scf.if %2 {
      %cst_10 = arith.constant 0.000000e+00 : f32
      %12 = vector.broadcast %cst_10 : f32 to vector<512x128xf32>
      %c0_11 = arith.constant 0 : index
      %c0_12 = arith.constant 0 : index
      %13 = vector.load %arg5[%c0_11, %c0_12] : memref<512x128xf32, #tpu.memory_space<vmem>>, vector<512x128xf32>
      tpu.vector_store %arg5[%c0_11, %c0_12], %12 {strides = array<i32>} : memref<512x128xf32, #tpu.memory_space<vmem>>, vector<512x128xf32>,
      %cst_13 = arith.constant 0.000000e+00 : f32
      %14 = vector.broadcast %cst_13 : f32 to vector<1x1x128xf32>
      %c0_14 = arith.constant 0 : index
      %c0_15 = arith.constant 0 : index
      %c0_16 = arith.constant 0 : index
      %15 = vector.load %arg6[%c0_14, %c0_15, %c0_16] : memref<1x1x128xf32, #tpu.memory_space<vmem>>, vector<1x1x128xf32>
      tpu.vector_store %arg6[%c0_14, %c0_15, %c0_16], %14 {strides = array<i32>} : memref<1x1x128xf32, #tpu.memory_space<vmem>>, vector<1x1x128xf32>,
      %cst_17 = arith.constant 0.000000e+00 : f32
      %16 = vector.broadcast %cst_17 : f32 to vector<1x1x128xf32>
      %c0_18 = arith.constant 0 : index
      %c0_19 = arith.constant 0 : index
      %c0_20 = arith.constant 0 : index
      %17 = vector.load %arg7[%c0_18, %c0_19, %c0_20] : memref<1x1x128xf32, #tpu.memory_space<vmem>>, vector<1x1x128xf32>
      tpu.vector_store %arg7[%c0_18, %c0_19, %c0_20], %16 {strides = array<i32>} : memref<1x1x128xf32, #tpu.memory_space<vmem>>, vector<1x1x128xf32>,
    } else {
    }
    %c0 = arith.constant 0 : index
    %c0_1 = arith.constant 0 : index
    %3 = vector.load %arg5[%c0, %c0_1] : memref<512x128xf32, #tpu.memory_space<vmem>>, vector<512x128xf32>
    %c0_2 = arith.constant 0 : index
    %c0_3 = arith.constant 0 : index
    %4 = vector.load %arg3[%c0_2, %c0_3] : memref<512x128xf32, #tpu.memory_space<vmem>>, vector<512x128xf32>
    %c0_4 = arith.constant 0 : index
    %c0_5 = arith.constant 0 : index
    %5 = vector.load %arg4[%c0_4, %c0_5] : memref<128x128xf32, #tpu.memory_space<vmem>>, vector<128x128xf32>
    %cst = arith.constant dense<0.000000e+00> : vector<512x128xf32>
    %6 = tpu.matmul %4, %5, %cst {dimension_numbers = #tpu.dot_dimension_numbers<[1], [0], [0], [1], [0, 0, 1, 1], [], []>} : vector<512x128xf32>, vector<128x128xf32>, vector<512x128xf32> -> vector<512x128xf32>
    %7 = arith.addf %3, %6 : vector<512x128xf32>
    %c0_6 = arith.constant 0 : index
    %c0_7 = arith.constant 0 : index
    %8 = vector.load %arg5[%c0_6, %c0_7] : memref<512x128xf32, #tpu.memory_space<vmem>>, vector<512x128xf32>
    tpu.vector_store %arg5[%c0_6, %c0_7], %7 {strides = array<i32>} : memref<512x128xf32, #tpu.memory_space<vmem>>, vector<512x128xf32>,
    %c0_i32_8 = arith.constant 0 : i32
    %9 = arith.cmpi eq, %arg2, %c0_i32_8 : i32
    %10 = arith.extui %9 : i1 to i32
    %c0_i32_9 = arith.constant 0 : i32
    %11 = arith.cmpi ne, %10, %c0_i32_9 : i32
    scf.if %11 {
      %c0_10 = arith.constant 0 : index
      %c0_11 = arith.constant 0 : index
      %12 = vector.load %arg5[%c0_10, %c0_11] : memref<512x128xf32, #tpu.memory_space<vmem>>, vector<512x128xf32>
      %cst_12 = arith.constant dense<0.000000e+00> : vector<128xf32>
      %13 = vector.multi_reduction <add>, %12, %cst_12 [0] : vector<512x128xf32> to vector<128xf32>
      %14 = vector.shape_cast %13 : vector<128xf32> to vector<1x128xf32>
      %15 = vector.shape_cast %14 : vector<1x128xf32> to vector<1x1x128xf32>
      %c0_13 = arith.constant 0 : index
      %c0_14 = arith.constant 0 : index
      %c0_15 = arith.constant 0 : index
      %16 = vector.load %arg6[%c0_13, %c0_14, %c0_15] : memref<1x1x128xf32, #tpu.memory_space<vmem>>, vector<1x1x128xf32>
      tpu.vector_store %arg6[%c0_13, %c0_14, %c0_15], %15 {strides = array<i32>} : memref<1x1x128xf32, #tpu.memory_space<vmem>>, vector<1x1x128xf32>,
      %17 = arith.mulf %12, %12 : vector<512x128xf32>
      %cst_16 = arith.constant dense<0.000000e+00> : vector<128xf32>
      %18 = vector.multi_reduction <add>, %17, %cst_16 [0] : vector<512x128xf32> to vector<128xf32>
      %19 = vector.shape_cast %18 : vector<128xf32> to vector<1x128xf32>
      %20 = vector.shape_cast %19 : vector<1x128xf32> to vector<1x1x128xf32>
      %c0_17 = arith.constant 0 : index
      %c0_18 = arith.constant 0 : index
      %c0_19 = arith.constant 0 : index
      %21 = vector.load %arg7[%c0_17, %c0_18, %c0_19] : memref<1x1x128xf32, #tpu.memory_space<vmem>>, vector<1x1x128xf32>
      tpu.vector_store %arg7[%c0_17, %c0_18, %c0_19], %20 {strides = array<i32>} : memref<1x1x128xf32, #tpu.memory_space<vmem>>, vector<1x1x128xf32>,
    } else {
    }
    return
  }
  func.func @transform_0(%arg0: i32, %arg1: i32, %arg2: i32) -> (i32, i32) {
    %c0_i32 = arith.constant 0 : i32
    return %arg0, %arg2 : i32, i32
  }
  func.func @transform_1(%arg0: i32, %arg1: i32, %arg2: i32) -> (i32, i32) {
    %c0_i32 = arith.constant 0 : i32
    return %arg2, %arg1 : i32, i32
  }
  func.func @transform_2(%arg0: i32, %arg1: i32, %arg2: i32) -> (i32, i32) {
    %c0_i32 = arith.constant 0 : i32
    return %arg0, %arg1 : i32, i32
  }
  func.func @transform_3(%arg0: i32, %arg1: i32, %arg2: i32) -> (i32, i32, i32) {
    %c0_i32 = arith.constant 0 : i32
    %c0_i32_0 = arith.constant 0 : i32
    return %arg0, %c0_i32, %arg1 : i32, i32, i32
  }
  func.func @transform_4(%arg0: i32, %arg1: i32, %arg2: i32) -> (i32, i32, i32) {
    %c0_i32 = arith.constant 0 : i32
    %c0_i32_0 = arith.constant 0 : i32
    return %arg0, %c0_i32, %arg1 : i32, i32, i32
  }
}

</mosaic_0001>

<llo_original>
// kernel: tpu_custom_call.1
$region0: #{tpu_custom_call.1}
  #allocation0 [shape = 'u32[]', space=smem, size = 0x4, offset = 0x4, fixed_abs, tag = 'smem constant byte address 0x4 - core index']
  #allocation1 [shape = 'u32[144,128]{1,0:T(1,128)}', space=vmem, size = 0x12000, scoped, tag = 'internal scratch']
  %s0 = inlined_call_operand.hbm [shape: f32[512,128], index: 0, kind: input, shape index: {}]
  %s1 = inlined_call_operand.hbm [shape: f32[128,128], index: 1, kind: input, shape index: {}]
  %s2 = inlined_call_operand.hbm [shape: f32[512,128], index: 2, kind: output, shape index: {0}]
  %s3 = inlined_call_operand.hbm [shape: f32[1,1,128], index: 3, kind: output, shape index: {1}]
  %s4 = inlined_call_operand.hbm [shape: f32[1,1,128], index: 4, kind: output, shape index: {2}]
  %5 = xla_tuple %s2, %s3, %s4
  %s6 = sld [smem:[#allocation0]]
  $region50: #{tpu_custom_call.1} parent=0
    _
  %s8 = ssub.s32 1, %s6
  %s9 = scalar_select 0, %s8, %s6
  $region1: #{tpu_custom_call.1} parent=0
    #allocation2 [shape = 'u8[262144]{0}', space=vmem, size = 0x40000, scoped, tag = 'input window, operand 0, single buffered']
    #allocation3 [shape = 's32[1]{0}', space=sflag, size = 0x4, scoped, tag = 'scoped memory for tpu_custom_call.1']
    #allocation4 [shape = 's32[1]{0}', space=sflag, size = 0x4, scoped, tag = 'scoped memory for tpu_custom_call.1']
    #allocation5 [shape = 'u8[65536]{0}', space=vmem, size = 0x10000, scoped, tag = 'input window, operand 1, single buffered']
    #allocation6 [shape = 's32[1]{0}', space=sflag, size = 0x4, scoped, tag = 'scoped memory for tpu_custom_call.1']
    #allocation7 [shape = 'u8[262144]{0}', space=vmem, size = 0x40000, scoped, tag = 'output window, operand 0, single buffered']
    #allocation8 [shape = 'u8[512]{0}', space=vmem, size = 0x400, scoped, tag = 'output window, operand 1, single buffered']
    #allocation9 [shape = 's32[1]{0}', space=sflag, size = 0x4, scoped, tag = 'scoped memory for tpu_custom_call.1']
    #allocation10 [shape = 'u8[512]{0}', space=vmem, size = 0x400, scoped, tag = 'output window, operand 2, single buffered']
    %10 = vsyncpa [#allocation3], 0
    %11 = vsyncpa [#allocation6], 0
    %12 = vsyncpa [#allocation4], 0
    %13 = vsyncpa [#allocation9], 0
    // Predicated region
    $region2: #{tpu_custom_call.1} parent=1 // pred_check
      _
    $region3: #{tpu_custom_call.1} parent=1 // pred_check_branch
      %15 = sbr.rel (0) target = $region5
    $region4: #{tpu_custom_call.1} parent=1 // pred_region
      %s17 = ssub.s32 8192, 8192
      %18 = vsyncadd [#allocation3], %s17
      %s19 = sshll.u32 [#allocation2], 4
      %s20 = int_to_ptr.vmem [resolvable:$true] %s19
      %25 = dma.hbm_to_vmem [thread:$0]  %s0, 8192, %s20, [#allocation3], 128, 128, 8
    $region5: #{tpu_custom_call.1} parent=1 // pred_fallthru
      _
    // Predicated region
    $region6: #{tpu_custom_call.1} parent=1 // pred_check
      _
    $region7: #{tpu_custom_call.1} parent=1 // pred_check_branch
      %27 = sbr.rel (0) target = $region9
    $region8: #{tpu_custom_call.1} parent=1 // pred_region
      %s29 = ssub.s32 2048, 2048
      %30 = vsyncadd [#allocation6], %s29
      %s31 = sshll.u32 [#allocation5], 4
      %s32 = int_to_ptr.vmem [resolvable:$true] %s31
      %37 = dma.hbm_to_vmem [thread:$0]  %s1, 2048, %s32, [#allocation6], 128, 128, 8
    $region9: #{tpu_custom_call.1} parent=1 // pred_fallthru
      _
    // Predicated region
    $region10: #{tpu_custom_call.1} parent=1 // pred_check
      _
    $region11: #{tpu_custom_call.1} parent=1 // pred_check_branch
      %39 = sbr.rel (0) target = $region13
    $region12: #{tpu_custom_call.1} parent=1 // pred_region
      %40 = dma.done [#allocation3], 8192
    $region13: #{tpu_custom_call.1} parent=1 // pred_fallthru
      _
    // Predicated region
    $region14: #{tpu_custom_call.1} parent=1 // pred_check
      _
    $region15: #{tpu_custom_call.1} parent=1 // pred_check_branch
      %42 = sbr.rel (0) target = $region17
    $region16: #{tpu_custom_call.1} parent=1 // pred_region
      %43 = dma.done [#allocation6], 2048
    $region17: #{tpu_custom_call.1} parent=1 // pred_fallthru
      _
    %p44 = scmp.eq.s32.totalorder 0, 0
    // Predicated region
    $region18: #{tpu_custom_call.1} parent=1 // pred_check
      %p45 = pneg %p44
    $region19: #{tpu_custom_call.1} parent=1 // pred_check_branch
      %47 = sbr.rel (%p45) target = $region21
    $region20: #{tpu_custom_call.1} parent=1 // pred_region
      %48 = vst [vmem:[#allocation7] sm:$0xff] 0.0
      %49 = vst [vmem:[#allocation7 + $0x8] sm:$0xff] 0.0
      %50 = vst [vmem:[#allocation7 + $0x10] sm:$0xff] 0.0
      %51 = vst [vmem:[#allocation7 + $0x18] sm:$0xff] 0.0
      %52 = vst [vmem:[#allocation7 + $0x20] sm:$0xff] 0.0
      %53 = vst [vmem:[#allocation7 + $0x28] sm:$0xff] 0.0
      %54 = vst [vmem:[#allocation7 + $0x30] sm:$0xff] 0.0
      %55 = vst [vmem:[#allocation7 + $0x38] sm:$0xff] 0.0
      %56 = vst [vmem:[#allocation7 + $0x40] sm:$0xff] 0.0
      %57 = vst [vmem:[#allocation7 + $0x48] sm:$0xff] 0.0
      %58 = vst [vmem:[#allocation7 + $0x50] sm:$0xff] 0.0
      %59 = vst [vmem:[#allocation7 + $0x58] sm:$0xff] 0.0
      %60 = vst [vmem:[#allocation7 + $0x60] sm:$0xff] 0.0
      %61 = vst [vmem:[#allocation7 + $0x68] sm:$0xff] 0.0
      %62 = vst [vmem:[#allocation7 + $0x70] sm:$0xff] 0.0
      %63 = vst [vmem:[#allocation7 + $0x78] sm:$0xff] 0.0
      %64 = vst [vmem:[#allocation7 + $0x80] sm:$0xff] 0.0
      %65 = vst [vmem:[#allocation7 + $0x88] sm:$0xff] 0.0
      %66 = vst [vmem:[#allocation7 + $0x90] sm:$0xff] 0.0
      %67 = vst [vmem:[#allocation7 + $0x98] sm:$0xff] 0.0
      %68 = vst [vmem:[#allocation7 + $0xa0] sm:$0xff] 0.0
      %69 = vst [vmem:[#allocation7 + $0xa8] sm:$0xff] 0.0
      %70 = vst [vmem:[#allocation7 + $0xb0] sm:$0xff] 0.0
      %71 = vst [vmem:[#allocation7 + $0xb8] sm:$0xff] 0.0
      %72 = vst [vmem:[#allocation7 + $0xc0] sm:$0xff] 0.0
      %73 = vst [vmem:[#allocation7 + $0xc8] sm:$0xff] 0.0
      %74 = vst [vmem:[#allocation7 + $0xd0] sm:$0xff] 0.0
      %75 = vst [vmem:[#allocation7 + $0xd8] sm:$0xff] 0.0
      %76 = vst [vmem:[#allocation7 + $0xe0] sm:$0xff] 0.0
      %77 = vst [vmem:[#allocation7 + $0xe8] sm:$0xff] 0.0
      %78 = vst [vmem:[#allocation7 + $0xf0] sm:$0xff] 0.0
      %79 = vst [vmem:[#allocation7 + $0xf8] sm:$0xff] 0.0
      %80 = vst [vmem:[#allocation7 + $0x100] sm:$0xff] 0.0
      %81 = vst [vmem:[#allocation7 + $0x108] sm:$0xff] 0.0
      %82 = vst [vmem:[#allocation7 + $0x110] sm:$0xff] 0.0
      %83 = vst [vmem:[#allocation7 + $0x118] sm:$0xff] 0.0
      %84 = vst [vmem:[#allocation7 + $0x120] sm:$0xff] 0.0
      %85 = vst [vmem:[#allocation7 + $0x128] sm:$0xff] 0.0
      %86 = vst [vmem:[#allocation7 + $0x130] sm:$0xff] 0.0
      %87 = vst [vmem:[#allocation7 + $0x138] sm:$0xff] 0.0
      %88 = vst [vmem:[#allocation7 + $0x140] sm:$0xff] 0.0
      %89 = vst [vmem:[#allocation7 + $0x148] sm:$0xff] 0.0
      %90 = vst [vmem:[#allocation7 + $0x150] sm:$0xff] 0.0
      %91 = vst [vmem:[#allocation7 + $0x158] sm:$0xff] 0.0
      %92 = vst [vmem:[#allocation7 + $0x160] sm:$0xff] 0.0
      %93 = vst [vmem:[#allocation7 + $0x168] sm:$0xff] 0.0
      %94 = vst [vmem:[#allocation7 + $0x170] sm:$0xff] 0.0
      %95 = vst [vmem:[#allocation7 + $0x178] sm:$0xff] 0.0
      %96 = vst [vmem:[#allocation7 + $0x180] sm:$0xff] 0.0
      %97 = vst [vmem:[#allocation7 + $0x188] sm:$0xff] 0.0
      %98 = vst [vmem:[#allocation7 + $0x190] sm:$0xff] 0.0
      %99 = vst [vmem:[#allocation7 + $0x198] sm:$0xff] 0.0
      %100 = vst [vmem:[#allocation7 + $0x1a0] sm:$0xff] 0.0
      %101 = vst [vmem:[#allocation7 + $0x1a8] sm:$0xff] 0.0
      %102 = vst [vmem:[#allocation7 + $0x1b0] sm:$0xff] 0.0
      %103 = vst [vmem:[#allocation7 + $0x1b8] sm:$0xff] 0.0
      %104 = vst [vmem:[#allocation7 + $0x1c0] sm:$0xff] 0.0
      %105 = vst [vmem:[#allocation7 + $0x1c8] sm:$0xff] 0.0
      %106 = vst [vmem:[#allocation7 + $0x1d0] sm:$0xff] 0.0
      %107 = vst [vmem:[#allocation7 + $0x1d8] sm:$0xff] 0.0
      %108 = vst [vmem:[#allocation7 + $0x1e0] sm:$0xff] 0.0
      %109 = vst [vmem:[#allocation7 + $0x1e8] sm:$0xff] 0.0
      %110 = vst [vmem:[#allocation7 + $0x1f0] sm:$0xff] 0.0
      %111 = vst [vmem:[#allocation7 + $0x1f8] sm:$0xff] 0.0
      %112 = vst [vmem:[#allocation8] sm:$0x1] 0.0
      %113 = vst [vmem:[#allocation10] sm:$0x1] 0.0
    $region21: #{tpu_custom_call.1} parent=1 // pred_fallthru
      _
    %v114 = vld [vmem:[#allocation7] sm:$0xff]
    %v115 = vld [vmem:[#allocation7 + $0x8] sm:$0xff]
    %v116 = vld [vmem:[#allocation7 + $0x10] sm:$0xff]
    %v117 = vld [vmem:[#allocation7 + $0x18] sm:$0xff]
    %v118 = vld [vmem:[#allocation7 + $0x20] sm:$0xff]
    %v119 = vld [vmem:[#allocation7 + $0x28] sm:$0xff]
    %v120 = vld [vmem:[#allocation7 + $0x30] sm:$0xff]
    %v121 = vld [vmem:[#allocation7 + $0x38] sm:$0xff]
    %v122 = vld [vmem:[#allocation7 + $0x40] sm:$0xff]
    %v123 = vld [vmem:[#allocation7 + $0x48] sm:$0xff]
    %v124 = vld [vmem:[#allocation7 + $0x50] sm:$0xff]
    %v125 = vld [vmem:[#allocation7 + $0x58] sm:$0xff]
    %v126 = vld [vmem:[#allocation7 + $0x60] sm:$0xff]
    %v127 = vld [vmem:[#allocation7 + $0x68] sm:$0xff]
    %v128 = vld [vmem:[#allocation7 + $0x70] sm:$0xff]
    %v129 = vld [vmem:[#allocation7 + $0x78] sm:$0xff]
    %v130 = vld [vmem:[#allocation7 + $0x80] sm:$0xff]
    %v131 = vld [vmem:[#allocation7 + $0x88] sm:$0xff]
    %v132 = vld [vmem:[#allocation7 + $0x90] sm:$0xff]
    %v133 = vld [vmem:[#allocation7 + $0x98] sm:$0xff]
    %v134 = vld [vmem:[#allocation7 + $0xa0] sm:$0xff]
    %v135 = vld [vmem:[#allocation7 + $0xa8] sm:$0xff]
    %v136 = vld [vmem:[#allocation7 + $0xb0] sm:$0xff]
    %v137 = vld [vmem:[#allocation7 + $0xb8] sm:$0xff]
    %v138 = vld [vmem:[#allocation7 + $0xc0] sm:$0xff]
    %v139 = vld [vmem:[#allocation7 + $0xc8] sm:$0xff]
    %v140 = vld [vmem:[#allocation7 + $0xd0] sm:$0xff]
    %v141 = vld [vmem:[#allocation7 + $0xd8] sm:$0xff]
    %v142 = vld [vmem:[#allocation7 + $0xe0] sm:$0xff]
    %v143 = vld [vmem:[#allocation7 + $0xe8] sm:$0xff]
    %v144 = vld [vmem:[#allocation7 + $0xf0] sm:$0xff]
    %v145 = vld [vmem:[#allocation7 + $0xf8] sm:$0xff]
    %v146 = vld [vmem:[#allocation7 + $0x100] sm:$0xff]
    %v147 = vld [vmem:[#allocation7 + $0x108] sm:$0xff]
    %v148 = vld [vmem:[#allocation7 + $0x110] sm:$0xff]
    %v149 = vld [vmem:[#allocation7 + $0x118] sm:$0xff]
    %v150 = vld [vmem:[#allocation7 + $0x120] sm:$0xff]
    %v151 = vld [vmem:[#allocation7 + $0x128] sm:$0xff]
    %v152 = vld [vmem:[#allocation7 + $0x130] sm:$0xff]
    %v153 = vld [vmem:[#allocation7 + $0x138] sm:$0xff]
    %v154 = vld [vmem:[#allocation7 + $0x140] sm:$0xff]
    %v155 = vld [vmem:[#allocation7 + $0x148] sm:$0xff]
    %v156 = vld [vmem:[#allocation7 + $0x150] sm:$0xff]
    %v157 = vld [vmem:[#allocation7 + $0x158] sm:$0xff]
    %v158 = vld [vmem:[#allocation7 + $0x160] sm:$0xff]
    %v159 = vld [vmem:[#allocation7 + $0x168] sm:$0xff]
    %v160 = vld [vmem:[#allocation7 + $0x170] sm:$0xff]
    %v161 = vld [vmem:[#allocation7 + $0x178] sm:$0xff]
    %v162 = vld [vmem:[#allocation7 + $0x180] sm:$0xff]
    %v163 = vld [vmem:[#allocation7 + $0x188] sm:$0xff]
    %v164 = vld [vmem:[#allocation7 + $0x190] sm:$0xff]
    %v165 = vld [vmem:[#allocation7 + $0x198] sm:$0xff]
    %v166 = vld [vmem:[#allocation7 + $0x1a0] sm:$0xff]
    %v167 = vld [vmem:[#allocation7 + $0x1a8] sm:$0xff]
    %v168 = vld [vmem:[#allocation7 + $0x1b0] sm:$0xff]
    %v169 = vld [vmem:[#allocation7 + $0x1b8] sm:$0xff]
    %v170 = vld [vmem:[#allocation7 + $0x1c0] sm:$0xff]
    %v171 = vld [vmem:[#allocation7 + $0x1c8] sm:$0xff]
    %v172 = vld [vmem:[#allocation7 + $0x1d0] sm:$0xff]
    %v173 = vld [vmem:[#allocation7 + $0x1d8] sm:$0xff]
    %v174 = vld [vmem:[#allocation7 + $0x1e0] sm:$0xff]
    %v175 = vld [vmem:[#allocation7 + $0x1e8] sm:$0xff]
    %v176 = vld [vmem:[#allocation7 + $0x1f0] sm:$0xff]
    %v177 = vld [vmem:[#allocation7 + $0x1f8] sm:$0xff]
    %v178 = vld [vmem:[#allocation2] sm:$0xff]
    %v179 = vld [vmem:[#allocation2 + $0x8] sm:$0xff]
    %v180 = vld [vmem:[#allocation2 + $0x10] sm:$0xff]
    %v181 = vld [vmem:[#allocation2 + $0x18] sm:$0xff]
    %v182 = vld [vmem:[#allocation2 + $0x20] sm:$0xff]
    %v183 = vld [vmem:[#allocation2 + $0x28] sm:$0xff]
    %v184 = vld [vmem:[#allocation2 + $0x30] sm:$0xff]
    %v185 = vld [vmem:[#allocation2 + $0x38] sm:$0xff]
    %v186 = vld [vmem:[#allocation2 + $0x40] sm:$0xff]
    %v187 = vld [vmem:[#allocation2 + $0x48] sm:$0xff]
    %v188 = vld [vmem:[#allocation2 + $0x50] sm:$0xff]
    %v189 = vld [vmem:[#allocation2 + $0x58] sm:$0xff]
    %v190 = vld [vmem:[#allocation2 + $0x60] sm:$0xff]
    %v191 = vld [vmem:[#allocation2 + $0x68] sm:$0xff]
    %v192 = vld [vmem:[#allocation2 + $0x70] sm:$0xff]
    %v193 = vld [vmem:[#allocation2 + $0x78] sm:$0xff]
    %v194 = vld [vmem:[#allocation2 + $0x80] sm:$0xff]
    %v195 = vld [vmem:[#allocation2 + $0x88] sm:$0xff]
    %v196 = vld [vmem:[#allocation2 + $0x90] sm:$0xff]
    %v197 = vld [vmem:[#allocation2 + $0x98] sm:$0xff]
    %v198 = vld [vmem:[#allocation2 + $0xa0] sm:$0xff]
    %v199 = vld [vmem:[#allocation2 + $0xa8] sm:$0xff]
    %v200 = vld [vmem:[#allocation2 + $0xb0] sm:$0xff]
    %v201 = vld [vmem:[#allocation2 + $0xb8] sm:$0xff]
    %v202 = vld [vmem:[#allocation2 + $0xc0] sm:$0xff]
    %v203 = vld [vmem:[#allocation2 + $0xc8] sm:$0xff]
    %v204 = vld [vmem:[#allocation2 + $0xd0] sm:$0xff]
    %v205 = vld [vmem:[#allocation2 + $0xd8] sm:$0xff]
    %v206 = vld [vmem:[#allocation2 + $0xe0] sm:$0xff]
    %v207 = vld [vmem:[#allocation2 + $0xe8] sm:$0xff]
    %v208 = vld [vmem:[#allocation2 + $0xf0] sm:$0xff]
    %v209 = vld [vmem:[#allocation2 + $0xf8] sm:$0xff]
    %v210 = vld [vmem:[#allocation2 + $0x100] sm:$0xff]
    %v211 = vld [vmem:[#allocation2 + $0x108] sm:$0xff]
    %v212 = vld [vmem:[#allocation2 + $0x110] sm:$0xff]
    %v213 = vld [vmem:[#allocation2 + $0x118] sm:$0xff]
    %v214 = vld [vmem:[#allocation2 + $0x120] sm:$0xff]
    %v215 = vld [vmem:[#allocation2 + $0x128] sm:$0xff]
    %v216 = vld [vmem:[#allocation2 + $0x130] sm:$0xff]
    %v217 = vld [vmem:[#allocation2 + $0x138] sm:$0xff]
    %v218 = vld [vmem:[#allocation2 + $0x140] sm:$0xff]
    %v219 = vld [vmem:[#allocation2 + $0x148] sm:$0xff]
    %v220 = vld [vmem:[#allocation2 + $0x150] sm:$0xff]
    %v221 = vld [vmem:[#allocation2 + $0x158] sm:$0xff]
    %v222 = vld [vmem:[#allocation2 + $0x160] sm:$0xff]
    %v223 = vld [vmem:[#allocation2 + $0x168] sm:$0xff]
    %v224 = vld [vmem:[#allocation2 + $0x170] sm:$0xff]
    %v225 = vld [vmem:[#allocation2 + $0x178] sm:$0xff]
    %v226 = vld [vmem:[#allocation2 + $0x180] sm:$0xff]
    %v227 = vld [vmem:[#allocation2 + $0x188] sm:$0xff]
    %v228 = vld [vmem:[#allocation2 + $0x190] sm:$0xff]
    %v229 = vld [vmem:[#allocation2 + $0x198] sm:$0xff]
    %v230 = vld [vmem:[#allocation2 + $0x1a0] sm:$0xff]
    %v231 = vld [vmem:[#allocation2 + $0x1a8] sm:$0xff]
    %v232 = vld [vmem:[#allocation2 + $0x1b0] sm:$0xff]
    %v233 = vld [vmem:[#allocation2 + $0x1b8] sm:$0xff]
    %v234 = vld [vmem:[#allocation2 + $0x1c0] sm:$0xff]
    %v235 = vld [vmem:[#allocation2 + $0x1c8] sm:$0xff]
    %v236 = vld [vmem:[#allocation2 + $0x1d0] sm:$0xff]
    %v237 = vld [vmem:[#allocation2 + $0x1d8] sm:$0xff]
    %v238 = vld [vmem:[#allocation2 + $0x1e0] sm:$0xff]
    %v239 = vld [vmem:[#allocation2 + $0x1e8] sm:$0xff]
    %v240 = vld [vmem:[#allocation2 + $0x1f0] sm:$0xff]
    %v241 = vld [vmem:[#allocation2 + $0x1f8] sm:$0xff]
    %v242 = vld [vmem:[#allocation5] sm:$0xff]
    %v243 = vld [vmem:[#allocation5 + $0x8] sm:$0xff]
    %v244 = vld [vmem:[#allocation5 + $0x10] sm:$0xff]
    %v245 = vld [vmem:[#allocation5 + $0x18] sm:$0xff]
    %v246 = vld [vmem:[#allocation5 + $0x20] sm:$0xff]
    %v247 = vld [vmem:[#allocation5 + $0x28] sm:$0xff]
    %v248 = vld [vmem:[#allocation5 + $0x30] sm:$0xff]
    %v249 = vld [vmem:[#allocation5 + $0x38] sm:$0xff]
    %v250 = vld [vmem:[#allocation5 + $0x40] sm:$0xff]
    %v251 = vld [vmem:[#allocation5 + $0x48] sm:$0xff]
    %v252 = vld [vmem:[#allocation5 + $0x50] sm:$0xff]
    %v253 = vld [vmem:[#allocation5 + $0x58] sm:$0xff]
    %v254 = vld [vmem:[#allocation5 + $0x60] sm:$0xff]
    %v255 = vld [vmem:[#allocation5 + $0x68] sm:$0xff]
    %v256 = vld [vmem:[#allocation5 + $0x70] sm:$0xff]
    %v257 = vld [vmem:[#allocation5 + $0x78] sm:$0xff]
    %258 = vmatprep.subr.mxu0 0.0
    %259 = vmatpush1.msra.mxu0 %v242
    %260 = vmatprep.subr.mxu0 0.0
    %261 = vmatpush1.msra.mxu0 %v243
    %262 = vmatprep.subr.mxu0 0.0
    %263 = vmatpush1.msra.mxu0 %v244
    %264 = vmatprep.subr.mxu0 0.0
    %265 = vmatpush1.msra.mxu0 %v245
    %266 = vmatprep.subr.mxu0 0.0
    %267 = vmatpush1.msra.mxu0 %v246
    %268 = vmatprep.subr.mxu0 0.0
    %269 = vmatpush1.msra.mxu0 %v247
    %270 = vmatprep.subr.mxu0 0.0
    %271 = vmatpush1.msra.mxu0 %v248
    %272 = vmatprep.subr.mxu0 0.0
    %273 = vmatpush1.msra.mxu0 %v249
    %274 = vmatprep.subr.mxu0 0.0
    %275 = vmatpush1.msra.mxu0 %v250
    %276 = vmatprep.subr.mxu0 0.0
    %277 = vmatpush1.msra.mxu0 %v251
    %278 = vmatprep.subr.mxu0 0.0
    %279 = vmatpush1.msra.mxu0 %v252
    %280 = vmatprep.subr.mxu0 0.0
    %281 = vmatpush1.msra.mxu0 %v253
    %282 = vmatprep.subr.mxu0 0.0
    %283 = vmatpush1.msra.mxu0 %v254
    %284 = vmatprep.subr.mxu0 0.0
    %285 = vmatpush1.msra.mxu0 %v255
    %286 = vmatprep.subr.mxu0 0.0
    %287 = vmatpush1.msra.mxu0 %v256
    %288 = vmatprep.subr.mxu0 0.0
    %289 = vmatpush1.msra.mxu0 %v257
    %290 = vmatprep.subr.mxu0 0.0
    %291 = vmatpush1.msra.mxu0 0.0
    %292 = vmatprep.subr.mxu0 0.0
    %293 = vmatpush1.msra.mxu0 0.0
    %294 = vmatprep.subr.mxu0 0.0
    %295 = vmatpush1.msra.mxu0 0.0
    %296 = vmatprep.subr.mxu0 0.0
    %297 = vmatpush1.msra.mxu0 0.0
    %298 = vmatprep.subr.mxu0 0.0
    %299 = vmatpush1.msra.mxu0 0.0
    %300 = vmatprep.subr.mxu0 0.0
    %301 = vmatpush1.msra.mxu0 0.0
    %302 = vmatprep.subr.mxu0 0.0
    %303 = vmatpush1.msra.mxu0 0.0
    %304 = vmatprep.subr.mxu0 0.0
    %305 = vmatpush1.msra.mxu0 0.0
    %306 = vmatprep.subr.mxu0 0.0
    %307 = vmatpush1.msra.mxu0 0.0
    %308 = vmatprep.subr.mxu0 0.0
    %309 = vmatpush1.msra.mxu0 0.0
    %310 = vmatprep.subr.mxu0 0.0
    %311 = vmatpush1.msra.mxu0 0.0
    %312 = vmatprep.subr.mxu0 0.0
    %313 = vmatpush1.msra.mxu0 0.0
    %314 = vmatprep.subr.mxu0 0.0
    %315 = vmatpush1.msra.mxu0 0.0
    %316 = vmatprep.subr.mxu0 0.0
    %317 = vmatpush1.msra.mxu0 0.0
    %318 = vmatprep.subr.mxu0 0.0
    %319 = vmatpush1.msra.mxu0 0.0
    %320 = vmatprep.subr.mxu0 0.0
    %321 = vmatpush1.msra.mxu0 0.0
    %322 = vmatprep.mubr.f32.mxu0 0.0
    %323 = vmatmul.mubr.f32.gmra.mrb[0].mxu0 %v178
    %v324 = vpop.f32.mrb[0].mxu0
    %v325 = vadd.f32 0.0, %v324
    %v326 = vpop.f32.mrb[0].mxu0
    %327 = vmatprep.mubr.f32.mxu0 0.0
    %328 = vmatmul.mubr.f32.gmra.mrb[0].mxu0 %v179
    %v329 = vpop.f32.mrb[0].mxu0
    %v330 = vadd.f32 0.0, %v329
    %v331 = vpop.f32.mrb[0].mxu0
    %332 = vmatprep.mubr.f32.mxu0 0.0
    %333 = vmatmul.mubr.f32.gmra.mrb[0].mxu0 %v180
    %v334 = vpop.f32.mrb[0].mxu0
    %v335 = vadd.f32 0.0, %v334
    %v336 = vpop.f32.mrb[0].mxu0
    %337 = vmatprep.mubr.f32.mxu0 0.0
    %338 = vmatmul.mubr.f32.gmra.mrb[0].mxu0 %v181
    %v339 = vpop.f32.mrb[0].mxu0
    %v340 = vadd.f32 0.0, %v339
    %v341 = vpop.f32.mrb[0].mxu0
    %342 = vmatprep.mubr.f32.mxu0 0.0
    %343 = vmatmul.mubr.f32.gmra.mrb[0].mxu0 %v182
    %v344 = vpop.f32.mrb[0].mxu0
    %v345 = vadd.f32 0.0, %v344
    %v346 = vpop.f32.mrb[0].mxu0
    %347 = vmatprep.mubr.f32.mxu0 0.0
    %348 = vmatmul.mubr.f32.gmra.mrb[0].mxu0 %v183
    %v349 = vpop.f32.mrb[0].mxu0
    %v350 = vadd.f32 0.0, %v349
    %v351 = vpop.f32.mrb[0].mxu0
    %352 = vmatprep.mubr.f32.mxu0 0.0
    %353 = vmatmul.mubr.f32.gmra.mrb[0].mxu0 %v184
    %v354 = vpop.f32.mrb[0].mxu0
    %v355 = vadd.f32 0.0, %v354
    %v356 = vpop.f32.mrb[0].mxu0
    %357 = vmatprep.mubr.f32.mxu0 0.0
    %358 = vmatmul.mubr.f32.gmra.mrb[0].mxu0 %v185
    %v359 = vpop.f32.mrb[0].mxu0
    %v360 = vadd.f32 0.0, %v359
    %v361 = vpop.f32.mrb[0].mxu0
    %362 = vmatprep.mubr.f32.mxu0 0.0
    %363 = vmatmul.mubr.f32.gmra.mrb[0].mxu0 %v186
    %v364 = vpop.f32.mrb[0].mxu0
    %v365 = vadd.f32 0.0, %v364
    %v366 = vpop.f32.mrb[0].mxu0
    %367 = vmatprep.mubr.f32.mxu0 0.0
    %368 = vmatmul.mubr.f32.gmra.mrb[0].mxu0 %v187
    %v369 = vpop.f32.mrb[0].mxu0
    %v370 = vadd.f32 0.0, %v369
    %v371 = vpop.f32.mrb[0].mxu0
    %372 = vmatprep.mubr.f32.mxu0 0.0
    %373 = vmatmul.mubr.f32.gmra.mrb[0].mxu0 %v188
    %v374 = vpop.f32.mrb[0].mxu0
    %v375 = vadd.f32 0.0, %v374
    %v376 = vpop.f32.mrb[0].mxu0
    %377 = vmatprep.mubr.f32.mxu0 0.0
    %378 = vmatmul.mubr.f32.gmra.mrb[0].mxu0 %v189
    %v379 = vpop.f32.mrb[0].mxu0
    %v380 = vadd.f32 0.0, %v379
    %v381 = vpop.f32.mrb[0].mxu0
    %382 = vmatprep.mubr.f32.mxu0 0.0
    %383 = vmatmul.mubr.f32.gmra.mrb[0].mxu0 %v190
    %v384 = vpop.f32.mrb[0].mxu0
    %v385 = vadd.f32 0.0, %v384
    %v386 = vpop.f32.mrb[0].mxu0
    %387 = vmatprep.mubr.f32.mxu0 0.0
    %388 = vmatmul.mubr.f32.gmra.mrb[0].mxu0 %v191
    %v389 = vpop.f32.mrb[0].mxu0
    %v390 = vadd.f32 0.0, %v389
    %v391 = vpop.f32.mrb[0].mxu0
    %392 = vmatprep.mubr.f32.mxu0 0.0
    %393 = vmatmul.mubr.f32.gmra.mrb[0].mxu0 %v192
    %v394 = vpop.f32.mrb[0].mxu0
    %v395 = vadd.f32 0.0, %v394
    %v396 = vpop.f32.mrb[0].mxu0
    %397 = vmatprep.mubr.f32.mxu0 0.0
    %398 = vmatmul.mubr.f32.gmra.mrb[0].mxu0 %v193
    %v399 = vpop.f32.mrb[0].mxu0
    %v400 = vadd.f32 0.0, %v399
    %v401 = vpop.f32.mrb[0].mxu0
    %402 = vmatprep.mubr.f32.mxu0 0.0
    %403 = vmatmul.mubr.f32.gmra.mrb[0].mxu0 %v194
    %v404 = vpop.f32.mrb[0].mxu0
    %v405 = vadd.f32 0.0, %v404
    %v406 = vpop.f32.mrb[0].mxu0
    %407 = vmatprep.mubr.f32.mxu0 0.0
    %408 = vmatmul.mubr.f32.gmra.mrb[0].mxu0 %v195
    %v409 = vpop.f32.mrb[0].mxu0
    %v410 = vadd.f32 0.0, %v409
    %v411 = vpop.f32.mrb[0].mxu0
    %412 = vmatprep.mubr.f32.mxu0 0.0
    %413 = vmatmul.mubr.f32.gmra.mrb[0].mxu0 %v196
    %v414 = vpop.f32.mrb[0].mxu0
    %v415 = vadd.f32 0.0, %v414
    %v416 = vpop.f32.mrb[0].mxu0
    %417 = vmatprep.mubr.f32.mxu0 0.0
    %418 = vmatmul.mubr.f32.gmra.mrb[0].mxu0 %v197
    %v419 = vpop.f32.mrb[0].mxu0
    %v420 = vadd.f32 0.0, %v419
    %v421 = vpop.f32.mrb[0].mxu0
    %422 = vmatprep.mubr.f32.mxu0 0.0
    %423 = vmatmul.mubr.f32.gmra.mrb[0].mxu0 %v198
    %v424 = vpop.f32.mrb[0].mxu0
    %v425 = vadd.f32 0.0, %v424
    %v426 = vpop.f32.mrb[0].mxu0
    %427 = vmatprep.mubr.f32.mxu0 0.0
    %428 = vmatmul.mubr.f32.gmra.mrb[0].mxu0 %v199
    %v429 = vpop.f32.mrb[0].mxu0
    %v430 = vadd.f32 0.0, %v429
    %v431 = vpop.f32.mrb[0].mxu0
    %432 = vmatprep.mubr.f32.mxu0 0.0
    %433 = vmatmul.mubr.f32.gmra.mrb[0].mxu0 %v200
    %v434 = vpop.f32.mrb[0].mxu0
    %v435 = vadd.f32 0.0, %v434
    %v436 = vpop.f32.mrb[0].mxu0
    %437 = vmatprep.mubr.f32.mxu0 0.0
    %438 = vmatmul.mubr.f32.gmra.mrb[0].mxu0 %v201
    %v439 = vpop.f32.mrb[0].mxu0
    %v440 = vadd.f32 0.0, %v439
    %v441 = vpop.f32.mrb[0].mxu0
    %442 = vmatprep.mubr.f32.mxu0 0.0
    %443 = vmatmul.mubr.f32.gmra.mrb[0].mxu0 %v202
    %v444 = vpop.f32.mrb[0].mxu0
    %v445 = vadd.f32 0.0, %v444
    %v446 = vpop.f32.mrb[0].mxu0
    %447 = vmatprep.mubr.f32.mxu0 0.0
    %448 = vmatmul.mubr.f32.gmra.mrb[0].mxu0 %v203
    %v449 = vpop.f32.mrb[0].mxu0
    %v450 = vadd.f32 0.0, %v449
    %v451 = vpop.f32.mrb[0].mxu0
    %452 = vmatprep.mubr.f32.mxu0 0.0
    %453 = vmatmul.mubr.f32.gmra.mrb[0].mxu0 %v204
    %v454 = vpop.f32.mrb[0].mxu0
    %v455 = vadd.f32 0.0, %v454
    %v456 = vpop.f32.mrb[0].mxu0
    %457 = vmatprep.mubr.f32.mxu0 0.0
    %458 = vmatmul.mubr.f32.gmra.mrb[0].mxu0 %v205
    %v459 = vpop.f32.mrb[0].mxu0
    %v460 = vadd.f32 0.0, %v459
    %v461 = vpop.f32.mrb[0].mxu0
    %462 = vmatprep.mubr.f32.mxu0 0.0
    %463 = vmatmul.mubr.f32.gmra.mrb[0].mxu0 %v206
    %v464 = vpop.f32.mrb[0].mxu0
    %v465 = vadd.f32 0.0, %v464
    %v466 = vpop.f32.mrb[0].mxu0
    %467 = vmatprep.mubr.f32.mxu0 0.0
    %468 = vmatmul.mubr.f32.gmra.mrb[0].mxu0 %v207
    %v469 = vpop.f32.mrb[0].mxu0
    %v470 = vadd.f32 0.0, %v469
    %v471 = vpop.f32.mrb[0].mxu0
    %472 = vmatprep.mubr.f32.mxu0 0.0
    %473 = vmatmul.mubr.f32.gmra.mrb[0].mxu0 %v208
    %v474 = vpop.f32.mrb[0].mxu0
    %v475 = vadd.f32 0.0, %v474
    %v476 = vpop.f32.mrb[0].mxu0
    %477 = vmatprep.mubr.f32.mxu0 0.0
    %478 = vmatmul.mubr.f32.gmra.mrb[0].mxu0 %v209
    %v479 = vpop.f32.mrb[0].mxu0
    %v480 = vadd.f32 0.0, %v479
    %v481 = vpop.f32.mrb[0].mxu0
    %482 = vmatprep.mubr.f32.mxu0 0.0
    %483 = vmatmul.mubr.f32.gmra.mrb[0].mxu0 %v210
    %v484 = vpop.f32.mrb[0].mxu0
    %v485 = vadd.f32 0.0, %v484
    %v486 = vpop.f32.mrb[0].mxu0
    %487 = vmatprep.mubr.f32.mxu0 0.0
    %488 = vmatmul.mubr.f32.gmra.mrb[0].mxu0 %v211
    %v489 = vpop.f32.mrb[0].mxu0
    %v490 = vadd.f32 0.0, %v489
    %v491 = vpop.f32.mrb[0].mxu0
    %492 = vmatprep.mubr.f32.mxu0 0.0
    %493 = vmatmul.mubr.f32.gmra.mrb[0].mxu0 %v212
    %v494 = vpop.f32.mrb[0].mxu0
    %v495 = vadd.f32 0.0, %v494
    %v496 = vpop.f32.mrb[0].mxu0
    %497 = vmatprep.mubr.f32.mxu0 0.0
    %498 = vmatmul.mubr.f32.gmra.mrb[0].mxu0 %v213
    %v499 = vpop.f32.mrb[0].mxu0
    %v500 = vadd.f32 0.0, %v499
    %v501 = vpop.f32.mrb[0].mxu0
    %502 = vmatprep.mubr.f32.mxu0 0.0
    %503 = vmatmul.mubr.f32.gmra.mrb[0].mxu0 %v214
    %v504 = vpop.f32.mrb[0].mxu0
    %v505 = vadd.f32 0.0, %v504
    %v506 = vpop.f32.mrb[0].mxu0
    %507 = vmatprep.mubr.f32.mxu0 0.0
    %508 = vmatmul.mubr.f32.gmra.mrb[0].mxu0 %v215
    %v509 = vpop.f32.mrb[0].mxu0
    %v510 = vadd.f32 0.0, %v509
    %v511 = vpop.f32.mrb[0].mxu0
    %512 = vmatprep.mubr.f32.mxu0 0.0
    %513 = vmatmul.mubr.f32.gmra.mrb[0].mxu0 %v216
    %v514 = vpop.f32.mrb[0].mxu0
    %v515 = vadd.f32 0.0, %v514
    %v516 = vpop.f32.mrb[0].mxu0
    %517 = vmatprep.mubr.f32.mxu0 0.0
    %518 = vmatmul.mubr.f32.gmra.mrb[0].mxu0 %v217
    %v519 = vpop.f32.mrb[0].mxu0
    %v520 = vadd.f32 0.0, %v519
    %v521 = vpop.f32.mrb[0].mxu0
    %522 = vmatprep.mubr.f32.mxu0 0.0
    %523 = vmatmul.mubr.f32.gmra.mrb[0].mxu0 %v218
    %v524 = vpop.f32.mrb[0].mxu0
    %v525 = vadd.f32 0.0, %v524
    %v526 = vpop.f32.mrb[0].mxu0
    %527 = vmatprep.mubr.f32.mxu0 0.0
    %528 = vmatmul.mubr.f32.gmra.mrb[0].mxu0 %v219
    %v529 = vpop.f32.mrb[0].mxu0
    %v530 = vadd.f32 0.0, %v529
    %v531 = vpop.f32.mrb[0].mxu0
    %532 = vmatprep.mubr.f32.mxu0 0.0
    %533 = vmatmul.mubr.f32.gmra.mrb[0].mxu0 %v220
    %v534 = vpop.f32.mrb[0].mxu0
    %v535 = vadd.f32 0.0, %v534
    %v536 = vpop.f32.mrb[0].mxu0
    %537 = vmatprep.mubr.f32.mxu0 0.0
    %538 = vmatmul.mubr.f32.gmra.mrb[0].mxu0 %v221
    %v539 = vpop.f32.mrb[0].mxu0
    %v540 = vadd.f32 0.0, %v539
    %v541 = vpop.f32.mrb[0].mxu0
    %542 = vmatprep.mubr.f32.mxu0 0.0
    %543 = vmatmul.mubr.f32.gmra.mrb[0].mxu0 %v222
    %v544 = vpop.f32.mrb[0].mxu0
    %v545 = vadd.f32 0.0, %v544
    %v546 = vpop.f32.mrb[0].mxu0
    %547 = vmatprep.mubr.f32.mxu0 0.0
    %548 = vmatmul.mubr.f32.gmra.mrb[0].mxu0 %v223
    %v549 = vpop.f32.mrb[0].mxu0
    %v550 = vadd.f32 0.0, %v549
    %v551 = vpop.f32.mrb[0].mxu0
    %552 = vmatprep.mubr.f32.mxu0 0.0
    %553 = vmatmul.mubr.f32.gmra.mrb[0].mxu0 %v224
    %v554 = vpop.f32.mrb[0].mxu0
    %v555 = vadd.f32 0.0, %v554
    %v556 = vpop.f32.mrb[0].mxu0
    %557 = vmatprep.mubr.f32.mxu0 0.0
    %558 = vmatmul.mubr.f32.gmra.mrb[0].mxu0 %v225
    %v559 = vpop.f32.mrb[0].mxu0
    %v560 = vadd.f32 0.0, %v559
    %v561 = vpop.f32.mrb[0].mxu0
    %562 = vmatprep.mubr.f32.mxu0 0.0
    %563 = vmatmul.mubr.f32.gmra.mrb[0].mxu0 %v226
    %v564 = vpop.f32.mrb[0].mxu0
    %v565 = vadd.f32 0.0, %v564
    %v566 = vpop.f32.mrb[0].mxu0
    %567 = vmatprep.mubr.f32.mxu0 0.0
    %568 = vmatmul.mubr.f32.gmra.mrb[0].mxu0 %v227
    %v569 = vpop.f32.mrb[0].mxu0
    %v570 = vadd.f32 0.0, %v569
    %v571 = vpop.f32.mrb[0].mxu0
    %572 = vmatprep.mubr.f32.mxu0 0.0
    %573 = vmatmul.mubr.f32.gmra.mrb[0].mxu0 %v228
    %v574 = vpop.f32.mrb[0].mxu0
    %v575 = vadd.f32 0.0, %v574
    %v576 = vpop.f32.mrb[0].mxu0
    %577 = vmatprep.mubr.f32.mxu0 0.0
    %578 = vmatmul.mubr.f32.gmra.mrb[0].mxu0 %v229
    %v579 = vpop.f32.mrb[0].mxu0
    %v580 = vadd.f32 0.0, %v579
    %v581 = vpop.f32.mrb[0].mxu0
    %582 = vmatprep.mubr.f32.mxu0 0.0
    %583 = vmatmul.mubr.f32.gmra.mrb[0].mxu0 %v230
    %v584 = vpop.f32.mrb[0].mxu0
    %v585 = vadd.f32 0.0, %v584
    %v586 = vpop.f32.mrb[0].mxu0
    %587 = vmatprep.mubr.f32.mxu0 0.0
    %588 = vmatmul.mubr.f32.gmra.mrb[0].mxu0 %v231
    %v589 = vpop.f32.mrb[0].mxu0
    %v590 = vadd.f32 0.0, %v589
    %v591 = vpop.f32.mrb[0].mxu0
    %592 = vmatprep.mubr.f32.mxu0 0.0
    %593 = vmatmul.mubr.f32.gmra.mrb[0].mxu0 %v232
    %v594 = vpop.f32.mrb[0].mxu0
    %v595 = vadd.f32 0.0, %v594
    %v596 = vpop.f32.mrb[0].mxu0
    %597 = vmatprep.mubr.f32.mxu0 0.0
    %598 = vmatmul.mubr.f32.gmra.mrb[0].mxu0 %v233
    %v599 = vpop.f32.mrb[0].mxu0
    %v600 = vadd.f32 0.0, %v599
    %v601 = vpop.f32.mrb[0].mxu0
    %602 = vmatprep.mubr.f32.mxu0 0.0
    %603 = vmatmul.mubr.f32.gmra.mrb[0].mxu0 %v234
    %v604 = vpop.f32.mrb[0].mxu0
    %v605 = vadd.f32 0.0, %v604
    %v606 = vpop.f32.mrb[0].mxu0
    %607 = vmatprep.mubr.f32.mxu0 0.0
    %608 = vmatmul.mubr.f32.gmra.mrb[0].mxu0 %v235
    %v609 = vpop.f32.mrb[0].mxu0
    %v610 = vadd.f32 0.0, %v609
    %v611 = vpop.f32.mrb[0].mxu0
    %612 = vmatprep.mubr.f32.mxu0 0.0
    %613 = vmatmul.mubr.f32.gmra.mrb[0].mxu0 %v236
    %v614 = vpop.f32.mrb[0].mxu0
    %v615 = vadd.f32 0.0, %v614
    %v616 = vpop.f32.mrb[0].mxu0
    %617 = vmatprep.mubr.f32.mxu0 0.0
    %618 = vmatmul.mubr.f32.gmra.mrb[0].mxu0 %v237
    %v619 = vpop.f32.mrb[0].mxu0
    %v620 = vadd.f32 0.0, %v619
    %v621 = vpop.f32.mrb[0].mxu0
    %622 = vmatprep.mubr.f32.mxu0 0.0
    %623 = vmatmul.mubr.f32.gmra.mrb[0].mxu0 %v238
    %v624 = vpop.f32.mrb[0].mxu0
    %v625 = vadd.f32 0.0, %v624
    %v626 = vpop.f32.mrb[0].mxu0
    %627 = vmatprep.mubr.f32.mxu0 0.0
    %628 = vmatmul.mubr.f32.gmra.mrb[0].mxu0 %v239
    %v629 = vpop.f32.mrb[0].mxu0
    %v630 = vadd.f32 0.0, %v629
    %v631 = vpop.f32.mrb[0].mxu0
    %632 = vmatprep.mubr.f32.mxu0 0.0
    %633 = vmatmul.mubr.f32.gmra.mrb[0].mxu0 %v240
    %v634 = vpop.f32.mrb[0].mxu0
    %v635 = vadd.f32 0.0, %v634
    %v636 = vpop.f32.mrb[0].mxu0
    %637 = vmatprep.mubr.f32.mxu0 0.0
    %638 = vmatmul.mubr.f32.gmra.mrb[0].mxu0 %v241
    %v639 = vpop.f32.mrb[0].mxu0
    %v640 = vadd.f32 0.0, %v639
    %v641 = vpop.f32.mrb[0].mxu0
    %642 = vdwg.mxu0
    %v643 = vadd.f32 %v114, %v325
    %v644 = vadd.f32 %v115, %v330
    %v645 = vadd.f32 %v116, %v335
    %v646 = vadd.f32 %v117, %v340
    %v647 = vadd.f32 %v118, %v345
    %v648 = vadd.f32 %v119, %v350
    %v649 = vadd.f32 %v120, %v355
    %v650 = vadd.f32 %v121, %v360
    %v651 = vadd.f32 %v122, %v365
    %v652 = vadd.f32 %v123, %v370
    %v653 = vadd.f32 %v124, %v375
    %v654 = vadd.f32 %v125, %v380
    %v655 = vadd.f32 %v126, %v385
    %v656 = vadd.f32 %v127, %v390
    %v657 = vadd.f32 %v128, %v395
    %v658 = vadd.f32 %v129, %v400
    %v659 = vadd.f32 %v130, %v405
    %v660 = vadd.f32 %v131, %v410
    %v661 = vadd.f32 %v132, %v415
    %v662 = vadd.f32 %v133, %v420
    %v663 = vadd.f32 %v134, %v425
    %v664 = vadd.f32 %v135, %v430
    %v665 = vadd.f32 %v136, %v435
    %v666 = vadd.f32 %v137, %v440
    %v667 = vadd.f32 %v138, %v445
    %v668 = vadd.f32 %v139, %v450
    %v669 = vadd.f32 %v140, %v455
    %v670 = vadd.f32 %v141, %v460
    %v671 = vadd.f32 %v142, %v465
    %v672 = vadd.f32 %v143, %v470
    %v673 = vadd.f32 %v144, %v475
    %v674 = vadd.f32 %v145, %v480
    %v675 = vadd.f32 %v146, %v485
    %v676 = vadd.f32 %v147, %v490
    %v677 = vadd.f32 %v148, %v495
    %v678 = vadd.f32 %v149, %v500
    %v679 = vadd.f32 %v150, %v505
    %v680 = vadd.f32 %v151, %v510
    %v681 = vadd.f32 %v152, %v515
    %v682 = vadd.f32 %v153, %v520
    %v683 = vadd.f32 %v154, %v525
    %v684 = vadd.f32 %v155, %v530
    %v685 = vadd.f32 %v156, %v535
    %v686 = vadd.f32 %v157, %v540
    %v687 = vadd.f32 %v158, %v545
    %v688 = vadd.f32 %v159, %v550
    %v689 = vadd.f32 %v160, %v555
    %v690 = vadd.f32 %v161, %v560
    %v691 = vadd.f32 %v162, %v565
    %v692 = vadd.f32 %v163, %v570
    %v693 = vadd.f32 %v164, %v575
    %v694 = vadd.f32 %v165, %v580
    %v695 = vadd.f32 %v166, %v585
    %v696 = vadd.f32 %v167, %v590
    %v697 = vadd.f32 %v168, %v595
    %v698 = vadd.f32 %v169, %v600
    %v699 = vadd.f32 %v170, %v605
    %v700 = vadd.f32 %v171, %v610
    %v701 = vadd.f32 %v172, %v615
    %v702 = vadd.f32 %v173, %v620
    %v703 = vadd.f32 %v174, %v625
    %v704 = vadd.f32 %v175, %v630
    %v705 = vadd.f32 %v176, %v635
    %v706 = vadd.f32 %v177, %v640
    %707 = vst [vmem:[#allocation7] sm:$0xff] %v643
    %708 = vst [vmem:[#allocation7 + $0x8] sm:$0xff] %v644
    %709 = vst [vmem:[#allocation7 + $0x10] sm:$0xff] %v645
    %710 = vst [vmem:[#allocation7 + $0x18] sm:$0xff] %v646
    %711 = vst [vmem:[#allocation7 + $0x20] sm:$0xff] %v647
    %712 = vst [vmem:[#allocation7 + $0x28] sm:$0xff] %v648
    %713 = vst [vmem:[#allocation7 + $0x30] sm:$0xff] %v649
    %714 = vst [vmem:[#allocation7 + $0x38] sm:$0xff] %v650
    %715 = vst [vmem:[#allocation7 + $0x40] sm:$0xff] %v651
    %716 = vst [vmem:[#allocation7 + $0x48] sm:$0xff] %v652
    %717 = vst [vmem:[#allocation7 + $0x50] sm:$0xff] %v653
    %718 = vst [vmem:[#allocation7 + $0x58] sm:$0xff] %v654
    %719 = vst [vmem:[#allocation7 + $0x60] sm:$0xff] %v655
    %720 = vst [vmem:[#allocation7 + $0x68] sm:$0xff] %v656
    %721 = vst [vmem:[#allocation7 + $0x70] sm:$0xff] %v657
    %722 = vst [vmem:[#allocation7 + $0x78] sm:$0xff] %v658
    %723 = vst [vmem:[#allocation7 + $0x80] sm:$0xff] %v659
    %724 = vst [vmem:[#allocation7 + $0x88] sm:$0xff] %v660
    %725 = vst [vmem:[#allocation7 + $0x90] sm:$0xff] %v661
    %726 = vst [vmem:[#allocation7 + $0x98] sm:$0xff] %v662
    %727 = vst [vmem:[#allocation7 + $0xa0] sm:$0xff] %v663
    %728 = vst [vmem:[#allocation7 + $0xa8] sm:$0xff] %v664
    %729 = vst [vmem:[#allocation7 + $0xb0] sm:$0xff] %v665
    %730 = vst [vmem:[#allocation7 + $0xb8] sm:$0xff] %v666
    %731 = vst [vmem:[#allocation7 + $0xc0] sm:$0xff] %v667
    %732 = vst [vmem:[#allocation7 + $0xc8] sm:$0xff] %v668
    %733 = vst [vmem:[#allocation7 + $0xd0] sm:$0xff] %v669
    %734 = vst [vmem:[#allocation7 + $0xd8] sm:$0xff] %v670
    %735 = vst [vmem:[#allocation7 + $0xe0] sm:$0xff] %v671
    %736 = vst [vmem:[#allocation7 + $0xe8] sm:$0xff] %v672
    %737 = vst [vmem:[#allocation7 + $0xf0] sm:$0xff] %v673
    %738 = vst [vmem:[#allocation7 + $0xf8] sm:$0xff] %v674
    %739 = vst [vmem:[#allocation7 + $0x100] sm:$0xff] %v675
    %740 = vst [vmem:[#allocation7 + $0x108] sm:$0xff] %v676
    %741 = vst [vmem:[#allocation7 + $0x110] sm:$0xff] %v677
    %742 = vst [vmem:[#allocation7 + $0x118] sm:$0xff] %v678
    %743 = vst [vmem:[#allocation7 + $0x120] sm:$0xff] %v679
    %744 = vst [vmem:[#allocation7 + $0x128] sm:$0xff] %v680
    %745 = vst [vmem:[#allocation7 + $0x130] sm:$0xff] %v681
    %746 = vst [vmem:[#allocation7 + $0x138] sm:$0xff] %v682
    %747 = vst [vmem:[#allocation7 + $0x140] sm:$0xff] %v683
    %748 = vst [vmem:[#allocation7 + $0x148] sm:$0xff] %v684
    %749 = vst [vmem:[#allocation7 + $0x150] sm:$0xff] %v685
    %750 = vst [vmem:[#allocation7 + $0x158] sm:$0xff] %v686
    %751 = vst [vmem:[#allocation7 + $0x160] sm:$0xff] %v687
    %752 = vst [vmem:[#allocation7 + $0x168] sm:$0xff] %v688
    %753 = vst [vmem:[#allocation7 + $0x170] sm:$0xff] %v689
    %754 = vst [vmem:[#allocation7 + $0x178] sm:$0xff] %v690
    %755 = vst [vmem:[#allocation7 + $0x180] sm:$0xff] %v691
    %756 = vst [vmem:[#allocation7 + $0x188] sm:$0xff] %v692
    %757 = vst [vmem:[#allocation7 + $0x190] sm:$0xff] %v693
    %758 = vst [vmem:[#allocation7 + $0x198] sm:$0xff] %v694
    %759 = vst [vmem:[#allocation7 + $0x1a0] sm:$0xff] %v695
    %760 = vst [vmem:[#allocation7 + $0x1a8] sm:$0xff] %v696
    %761 = vst [vmem:[#allocation7 + $0x1b0] sm:$0xff] %v697
    %762 = vst [vmem:[#allocation7 + $0x1b8] sm:$0xff] %v698
    %763 = vst [vmem:[#allocation7 + $0x1c0] sm:$0xff] %v699
    %764 = vst [vmem:[#allocation7 + $0x1c8] sm:$0xff] %v700
    %765 = vst [vmem:[#allocation7 + $0x1d0] sm:$0xff] %v701
    %766 = vst [vmem:[#allocation7 + $0x1d8] sm:$0xff] %v702
    %767 = vst [vmem:[#allocation7 + $0x1e0] sm:$0xff] %v703
    %768 = vst [vmem:[#allocation7 + $0x1e8] sm:$0xff] %v704
    %769 = vst [vmem:[#allocation7 + $0x1f0] sm:$0xff] %v705
    %770 = vst [vmem:[#allocation7 + $0x1f8] sm:$0xff] %v706
    // Predicated region
    $region22: #{tpu_custom_call.1} parent=1 // pred_check
      %p771 = pneg %p44
    $region23: #{tpu_custom_call.1} parent=1 // pred_check_branch
      %773 = sbr.rel (%p771) target = $region25
    $region24: #{tpu_custom_call.1} parent=1 // pred_region
      %v774 = vld [vmem:[#allocation7] sm:$0xff]
      %v775 = vld [vmem:[#allocation7 + $0x8] sm:$0xff]
      %v776 = vld [vmem:[#allocation7 + $0x10] sm:$0xff]
      %v777 = vld [vmem:[#allocation7 + $0x18] sm:$0xff]
      %v778 = vld [vmem:[#allocation7 + $0x20] sm:$0xff]
      %v779 = vld [vmem:[#allocation7 + $0x28] sm:$0xff]
      %v780 = vld [vmem:[#allocation7 + $0x30] sm:$0xff]
      %v781 = vld [vmem:[#allocation7 + $0x38] sm:$0xff]
      %v782 = vld [vmem:[#allocation7 + $0x40] sm:$0xff]
      %v783 = vld [vmem:[#allocation7 + $0x48] sm:$0xff]
      %v784 = vld [vmem:[#allocation7 + $0x50] sm:$0xff]
      %v785 = vld [vmem:[#allocation7 + $0x58] sm:$0xff]
      %v786 = vld [vmem:[#allocation7 + $0x60] sm:$0xff]
      %v787 = vld [vmem:[#allocation7 + $0x68] sm:$0xff]
      %v788 = vld [vmem:[#allocation7 + $0x70] sm:$0xff]
      %v789 = vld [vmem:[#allocation7 + $0x78] sm:$0xff]
      %v790 = vld [vmem:[#allocation7 + $0x80] sm:$0xff]
      %v791 = vld [vmem:[#allocation7 + $0x88] sm:$0xff]
      %v792 = vld [vmem:[#allocation7 + $0x90] sm:$0xff]
      %v793 = vld [vmem:[#allocation7 + $0x98] sm:$0xff]
      %v794 = vld [vmem:[#allocation7 + $0xa0] sm:$0xff]
      %v795 = vld [vmem:[#allocation7 + $0xa8] sm:$0xff]
      %v796 = vld [vmem:[#allocation7 + $0xb0] sm:$0xff]
      %v797 = vld [vmem:[#allocation7 + $0xb8] sm:$0xff]
      %v798 = vld [vmem:[#allocation7 + $0xc0] sm:$0xff]
      %v799 = vld [vmem:[#allocation7 + $0xc8] sm:$0xff]
      %v800 = vld [vmem:[#allocation7 + $0xd0] sm:$0xff]
      %v801 = vld [vmem:[#allocation7 + $0xd8] sm:$0xff]
      %v802 = vld [vmem:[#allocation7 + $0xe0] sm:$0xff]
      %v803 = vld [vmem:[#allocation7 + $0xe8] sm:$0xff]
      %v804 = vld [vmem:[#allocation7 + $0xf0] sm:$0xff]
      %v805 = vld [vmem:[#allocation7 + $0xf8] sm:$0xff]
      %v806 = vld [vmem:[#allocation7 + $0x100] sm:$0xff]
      %v807 = vld [vmem:[#allocation7 + $0x108] sm:$0xff]
      %v808 = vld [vmem:[#allocation7 + $0x110] sm:$0xff]
      %v809 = vld [vmem:[#allocation7 + $0x118] sm:$0xff]
      %v810 = vld [vmem:[#allocation7 + $0x120] sm:$0xff]
      %v811 = vld [vmem:[#allocation7 + $0x128] sm:$0xff]
      %v812 = vld [vmem:[#allocation7 + $0x130] sm:$0xff]
      %v813 = vld [vmem:[#allocation7 + $0x138] sm:$0xff]
      %v814 = vld [vmem:[#allocation7 + $0x140] sm:$0xff]
      %v815 = vld [vmem:[#allocation7 + $0x148] sm:$0xff]
      %v816 = vld [vmem:[#allocation7 + $0x150] sm:$0xff]
      %v817 = vld [vmem:[#allocation7 + $0x158] sm:$0xff]
      %v818 = vld [vmem:[#allocation7 + $0x160] sm:$0xff]
      %v819 = vld [vmem:[#allocation7 + $0x168] sm:$0xff]
      %v820 = vld [vmem:[#allocation7 + $0x170] sm:$0xff]
      %v821 = vld [vmem:[#allocation7 + $0x178] sm:$0xff]
      %v822 = vld [vmem:[#allocation7 + $0x180] sm:$0xff]
      %v823 = vld [vmem:[#allocation7 + $0x188] sm:$0xff]
      %v824 = vld [vmem:[#allocation7 + $0x190] sm:$0xff]
      %v825 = vld [vmem:[#allocation7 + $0x198] sm:$0xff]
      %v826 = vld [vmem:[#allocation7 + $0x1a0] sm:$0xff]
      %v827 = vld [vmem:[#allocation7 + $0x1a8] sm:$0xff]
      %v828 = vld [vmem:[#allocation7 + $0x1b0] sm:$0xff]
      %v829 = vld [vmem:[#allocation7 + $0x1b8] sm:$0xff]
      %v830 = vld [vmem:[#allocation7 + $0x1c0] sm:$0xff]
      %v831 = vld [vmem:[#allocation7 + $0x1c8] sm:$0xff]
      %v832 = vld [vmem:[#allocation7 + $0x1d0] sm:$0xff]
      %v833 = vld [vmem:[#allocation7 + $0x1d8] sm:$0xff]
      %v834 = vld [vmem:[#allocation7 + $0x1e0] sm:$0xff]
      %v835 = vld [vmem:[#allocation7 + $0x1e8] sm:$0xff]
      %v836 = vld [vmem:[#allocation7 + $0x1f0] sm:$0xff]
      %v837 = vld [vmem:[#allocation7 + $0x1f8] sm:$0xff]
      %v838 = vadd.f32 %v774, %v775
      %v839 = vadd.f32 %v838, %v776
      %v840 = vadd.f32 %v839, %v777
      %v841 = vadd.f32 %v840, %v778
      %v842 = vadd.f32 %v841, %v779
      %v843 = vadd.f32 %v842, %v780
      %v844 = vadd.f32 %v843, %v781
      %v845 = vadd.f32 %v844, %v782
      %v846 = vadd.f32 %v845, %v783
      %v847 = vadd.f32 %v846, %v784
      %v848 = vadd.f32 %v847, %v785
      %v849 = vadd.f32 %v848, %v786
      %v850 = vadd.f32 %v849, %v787
      %v851 = vadd.f32 %v850, %v788
      %v852 = vadd.f32 %v851, %v789
      %v853 = vadd.f32 %v852, %v790
      %v854 = vadd.f32 %v853, %v791
      %v855 = vadd.f32 %v854, %v792
      %v856 = vadd.f32 %v855, %v793
      %v857 = vadd.f32 %v856, %v794
      %v858 = vadd.f32 %v857, %v795
      %v859 = vadd.f32 %v858, %v796
      %v860 = vadd.f32 %v859, %v797
      %v861 = vadd.f32 %v860, %v798
      %v862 = vadd.f32 %v861, %v799
      %v863 = vadd.f32 %v862, %v800
      %v864 = vadd.f32 %v863, %v801
      %v865 = vadd.f32 %v864, %v802
      %v866 = vadd.f32 %v865, %v803
      %v867 = vadd.f32 %v866, %v804
      %v868 = vadd.f32 %v867, %v805
      %v869 = vadd.f32 %v868, %v806
      %v870 = vadd.f32 %v869, %v807
      %v871 = vadd.f32 %v870, %v808
      %v872 = vadd.f32 %v871, %v809
      %v873 = vadd.f32 %v872, %v810
      %v874 = vadd.f32 %v873, %v811
      %v875 = vadd.f32 %v874, %v812
      %v876 = vadd.f32 %v875, %v813
      %v877 = vadd.f32 %v876, %v814
      %v878 = vadd.f32 %v877, %v815
      %v879 = vadd.f32 %v878, %v816
      %v880 = vadd.f32 %v879, %v817
      %v881 = vadd.f32 %v880, %v818
      %v882 = vadd.f32 %v881, %v819
      %v883 = vadd.f32 %v882, %v820
      %v884 = vadd.f32 %v883, %v821
      %v885 = vadd.f32 %v884, %v822
      %v886 = vadd.f32 %v885, %v823
      %v887 = vadd.f32 %v886, %v824
      %v888 = vadd.f32 %v887, %v825
      %v889 = vadd.f32 %v888, %v826
      %v890 = vadd.f32 %v889, %v827
      %v891 = vadd.f32 %v890, %v828
      %v892 = vadd.f32 %v891, %v829
      %v893 = vadd.f32 %v892, %v830
      %v894 = vadd.f32 %v893, %v831
      %v895 = vadd.f32 %v894, %v832
      %v896 = vadd.f32 %v895, %v833
      %v897 = vadd.f32 %v896, %v834
      %v898 = vadd.f32 %v897, %v835
      %v899 = vadd.f32 %v898, %v836
      %v900 = vadd.f32 %v899, %v837
      %v901 = vrot.slane %v900, 4
      %v902 = vadd.f32 %v900, %v901
      %v903 = vrot.slane %v902, 2
      %v904 = vadd.f32 %v902, %v903
      %v905 = vrot.slane %v904, 1
      %v906 = vadd.f32 %v904, %v905
      %907 = vst [vmem:[#allocation8] sm:$0x1] %v906
      %v908 = vmul.f32 %v774, %v774
      %v909 = vmul.f32 %v775, %v775
      %v910 = vmul.f32 %v776, %v776
      %v911 = vmul.f32 %v777, %v777
      %v912 = vmul.f32 %v778, %v778
      %v913 = vmul.f32 %v779, %v779
      %v914 = vmul.f32 %v780, %v780
      %v915 = vmul.f32 %v781, %v781
      %v916 = vmul.f32 %v782, %v782
      %v917 = vmul.f32 %v783, %v783
      %v918 = vmul.f32 %v784, %v784
      %v919 = vmul.f32 %v785, %v785
      %v920 = vmul.f32 %v786, %v786
      %v921 = vmul.f32 %v787, %v787
      %v922 = vmul.f32 %v788, %v788
      %v923 = vmul.f32 %v789, %v789
      %v924 = vmul.f32 %v790, %v790
      %v925 = vmul.f32 %v791, %v791
      %v926 = vmul.f32 %v792, %v792
      %v927 = vmul.f32 %v793, %v793
      %v928 = vmul.f32 %v794, %v794
      %v929 = vmul.f32 %v795, %v795
      %v930 = vmul.f32 %v796, %v796
      %v931 = vmul.f32 %v797, %v797
      %v932 = vmul.f32 %v798, %v798
      %v933 = vmul.f32 %v799, %v799
      %v934 = vmul.f32 %v800, %v800
      %v935 = vmul.f32 %v801, %v801
      %v936 = vmul.f32 %v802, %v802
      %v937 = vmul.f32 %v803, %v803
      %v938 = vmul.f32 %v804, %v804
      %v939 = vmul.f32 %v805, %v805
      %v940 = vmul.f32 %v806, %v806
      %v941 = vmul.f32 %v807, %v807
      %v942 = vmul.f32 %v808, %v808
      %v943 = vmul.f32 %v809, %v809
      %v944 = vmul.f32 %v810, %v810
      %v945 = vmul.f32 %v811, %v811
      %v946 = vmul.f32 %v812, %v812
      %v947 = vmul.f32 %v813, %v813
      %v948 = vmul.f32 %v814, %v814
      %v949 = vmul.f32 %v815, %v815
      %v950 = vmul.f32 %v816, %v816
      %v951 = vmul.f32 %v817, %v817
      %v952 = vmul.f32 %v818, %v818
      %v953 = vmul.f32 %v819, %v819
      %v954 = vmul.f32 %v820, %v820
      %v955 = vmul.f32 %v821, %v821
      %v956 = vmul.f32 %v822, %v822
      %v957 = vmul.f32 %v823, %v823
      %v958 = vmul.f32 %v824, %v824
      %v959 = vmul.f32 %v825, %v825
      %v960 = vmul.f32 %v826, %v826
      %v961 = vmul.f32 %v827, %v827
      %v962 = vmul.f32 %v828, %v828
      %v963 = vmul.f32 %v829, %v829
      %v964 = vmul.f32 %v830, %v830
      %v965 = vmul.f32 %v831, %v831
      %v966 = vmul.f32 %v832, %v832
      %v967 = vmul.f32 %v833, %v833
      %v968 = vmul.f32 %v834, %v834
      %v969 = vmul.f32 %v835, %v835
      %v970 = vmul.f32 %v836, %v836
      %v971 = vmul.f32 %v837, %v837
      %v972 = vadd.f32 %v908, %v909
      %v973 = vadd.f32 %v972, %v910
      %v974 = vadd.f32 %v973, %v911
      %v975 = vadd.f32 %v974, %v912
      %v976 = vadd.f32 %v975, %v913
      %v977 = vadd.f32 %v976, %v914
      %v978 = vadd.f32 %v977, %v915
      %v979 = vadd.f32 %v978, %v916
      %v980 = vadd.f32 %v979, %v917
      %v981 = vadd.f32 %v980, %v918
      %v982 = vadd.f32 %v981, %v919
      %v983 = vadd.f32 %v982, %v920
      %v984 = vadd.f32 %v983, %v921
      %v985 = vadd.f32 %v984, %v922
      %v986 = vadd.f32 %v985, %v923
      %v987 = vadd.f32 %v986, %v924
      %v988 = vadd.f32 %v987, %v925
      %v989 = vadd.f32 %v988, %v926
      %v990 = vadd.f32 %v989, %v927
      %v991 = vadd.f32 %v990, %v928
      %v992 = vadd.f32 %v991, %v929
      %v993 = vadd.f32 %v992, %v930
      %v994 = vadd.f32 %v993, %v931
      %v995 = vadd.f32 %v994, %v932
      %v996 = vadd.f32 %v995, %v933
      %v997 = vadd.f32 %v996, %v934
      %v998 = vadd.f32 %v997, %v935
      %v999 = vadd.f32 %v998, %v936
      %v1000 = vadd.f32 %v999, %v937
      %v1001 = vadd.f32 %v1000, %v938
      %v1002 = vadd.f32 %v1001, %v939
      %v1003 = vadd.f32 %v1002, %v940
      %v1004 = vadd.f32 %v1003, %v941
      %v1005 = vadd.f32 %v1004, %v942
      %v1006 = vadd.f32 %v1005, %v943
      %v1007 = vadd.f32 %v1006, %v944
      %v1008 = vadd.f32 %v1007, %v945
      %v1009 = vadd.f32 %v1008, %v946
      %v1010 = vadd.f32 %v1009, %v947
      %v1011 = vadd.f32 %v1010, %v948
      %v1012 = vadd.f32 %v1011, %v949
      %v1013 = vadd.f32 %v1012, %v950
      %v1014 = vadd.f32 %v1013, %v951
      %v1015 = vadd.f32 %v1014, %v952
      %v1016 = vadd.f32 %v1015, %v953
      %v1017 = vadd.f32 %v1016, %v954
      %v1018 = vadd.f32 %v1017, %v955
      %v1019 = vadd.f32 %v1018, %v956
      %v1020 = vadd.f32 %v1019, %v957
      %v1021 = vadd.f32 %v1020, %v958
      %v1022 = vadd.f32 %v1021, %v959
      %v1023 = vadd.f32 %v1022, %v960
      %v1024 = vadd.f32 %v1023, %v961
      %v1025 = vadd.f32 %v1024, %v962
      %v1026 = vadd.f32 %v1025, %v963
      %v1027 = vadd.f32 %v1026, %v964
      %v1028 = vadd.f32 %v1027, %v965
      %v1029 = vadd.f32 %v1028, %v966
      %v1030 = vadd.f32 %v1029, %v967
      %v1031 = vadd.f32 %v1030, %v968
      %v1032 = vadd.f32 %v1031, %v969
      %v1033 = vadd.f32 %v1032, %v970
      %v1034 = vadd.f32 %v1033, %v971
      %v1035 = vrot.slane %v1034, 4
      %v1036 = vadd.f32 %v1034, %v1035
      %v1037 = vrot.slane %v1036, 2
      %v1038 = vadd.f32 %v1036, %v1037
      %v1039 = vrot.slane %v1038, 1
      %v1040 = vadd.f32 %v1038, %v1039
      %1041 = vst [vmem:[#allocation10] sm:$0x1] %v1040
    $region25: #{tpu_custom_call.1} parent=1 // pred_fallthru
      _
    // Predicated region
    $region26: #{tpu_custom_call.1} parent=1 // pred_check
      _
    $region27: #{tpu_custom_call.1} parent=1 // pred_check_branch
      %1043 = sbr.rel (0) target = $region29
    $region28: #{tpu_custom_call.1} parent=1 // pred_region
      %s1045 = ssub.s32 8192, 8192
      %1046 = vsyncadd [#allocation4], %s1045
      %s1047 = sshll.u32 [#allocation7], 4
      %s1048 = int_to_ptr.vmem [resolvable:$true] %s1047
      %1053 = dma.vmem_to_hbm [thread:$0]  %s1048, 8192, %s2, [#allocation4], 128, 128, 8
    $region29: #{tpu_custom_call.1} parent=1 // pred_fallthru
      _
    // Predicated region
    $region30: #{tpu_custom_call.1} parent=1 // pred_check
      _
    $region31: #{tpu_custom_call.1} parent=1 // pred_check_branch
      %1055 = sbr.rel (0) target = $region33
    $region32: #{tpu_custom_call.1} parent=1 // pred_region
      %s1057 = ssub.s32 16, 16
      %1058 = vsyncadd [#allocation9], %s1057
      %s1060 = sshll.u32 [#allocation8], 4
      %s1061 = int_to_ptr.vmem [resolvable:$true] %s1060
      %1063 = dma.vmem_to_hbm [thread:$0]  %s1061, 16, %s3, [#allocation9]
    $region33: #{tpu_custom_call.1} parent=1 // pred_fallthru
      _
    // Predicated region
    $region34: #{tpu_custom_call.1} parent=1 // pred_check
      _
    $region35: #{tpu_custom_call.1} parent=1 // pred_check_branch
      %1065 = sbr.rel (0) target = $region37
    $region36: #{tpu_custom_call.1} parent=1 // pred_region
      %s1067 = ssub.s32 16, 16
      %1068 = vsyncadd [#allocation9], %s1067
      %s1070 = sshll.u32 [#allocation10], 4
      %s1071 = int_to_ptr.vmem [resolvable:$true] %s1070
      %1073 = dma.vmem_to_hbm [thread:$0]  %s1071, 16, %s4, [#allocation9]
    $region37: #{tpu_custom_call.1} parent=1 // pred_fallthru
      _
    // Predicated region
    $region38: #{tpu_custom_call.1} parent=1 // pred_check
      _
    $region39: #{tpu_custom_call.1} parent=1 // pred_check_branch
      %1075 = sbr.rel (0) target = $region41
    $region40: #{tpu_custom_call.1} parent=1 // pred_region
      %1076 = dma.done [#allocation4], 8192
    $region41: #{tpu_custom_call.1} parent=1 // pred_fallthru
      _
    // Predicated region
    $region42: #{tpu_custom_call.1} parent=1 // pred_check
      _
    $region43: #{tpu_custom_call.1} parent=1 // pred_check_branch
      %1078 = sbr.rel (0) target = $region45
    $region44: #{tpu_custom_call.1} parent=1 // pred_region
      %1079 = dma.done [#allocation9], 16
    $region45: #{tpu_custom_call.1} parent=1 // pred_fallthru
      _
    // Predicated region
    $region46: #{tpu_custom_call.1} parent=1 // pred_check
      _
    $region47: #{tpu_custom_call.1} parent=1 // pred_check_branch
      %1081 = sbr.rel (0) target = $region49
    $region48: #{tpu_custom_call.1} parent=1 // pred_region
      %1082 = dma.done [#allocation9], 16
    $region49: #{tpu_custom_call.1} parent=1 // pred_fallthru
      _
    %1083 = vsyncpa [#allocation3], 1
    %1084 = vsyncpa [#allocation6], 1
    %1085 = vsyncpa [#allocation4], 1
    %1086 = vsyncpa [#allocation9], 1

</llo_original>
